<compile_context>
chip_gen: v7x
topology: tpu7x:2x2x1
jax: 0.10.0
libtpu: 0.0.40
codegen_flags: <defaults>
</compile_context>

<pallas_src>
import jax
import jax.numpy as jnp
from jax.experimental import pallas as pl
from jax.experimental.pallas import tpu as pltpu

LANE = 128


# ----------------------------------------------------------------------------
# Fused PreNet kernel on one lane-tile of time steps:
#   o = relu(W2 @ relu(W1 @ x + b1) + b2), x: (C_in, tm), o: (D, tm)
# ----------------------------------------------------------------------------
def prenet_kernel(x_ref, w1_ref, b1_ref, w2_ref, b2_ref, o_ref):
    x = x_ref[...]                                                  # (C_in, tm) bf16
    h = jnp.dot(w1_ref[...], x, preferred_element_type=jnp.float32)  # (D, tm) f32
    h = jnp.maximum(h + b1_ref[...], 0.0)
    # TODO(synk): F.dropout(p, training=True) is applied here (and after the
    # second layer) whenever `training or not deterministic`; this kernel
    # implements the deterministic eval path only.
    y = jnp.dot(w2_ref[...], h.astype(jnp.bfloat16),
                preferred_element_type=jnp.float32)                  # (D, tm) f32
    o_ref[...] = jnp.maximum(y + b2_ref[...], 0.0)


def _pick_tile(m_pad, tile_m):
    """Largest lane-aligned tile that (a) divides m_pad exactly (no tail pad),
    (b) is <= tile_m, and (c) leaves >= 2 grid steps when m_pad allows it
    (keeps v7x's second TensorCore busy under dimension_semantics=parallel)."""
    k = m_pad // LANE
    max_t = max(1, min(tile_m // LANE, k))
    if k >= 2:
        max_t = min(max_t, k // 2)
    t = max(d for d in range(1, max_t + 1) if k % d == 0)
    return t * LANE


# ----------------------------------------------------------------------------
# Wrapper: (B, C, L) -> (C, B*L) -> kernel -> (B, D, L)
# ----------------------------------------------------------------------------
def prenet_forward(params, x, *, tile_m=1024):
    B, c_in, L = x.shape
    D = params["w1"].shape[0]
    M = B * L

    # (B, C, L) -> (C, B, L) -> (C, M): the minor (time) axis stays minor, so
    # this is a cheap sublane relayout, not a lane<->sublane transpose.
    x_cm = jnp.transpose(x, (1, 0, 2)).reshape(c_in, M).astype(jnp.bfloat16)

    # Lane-align M once; the tile picked below divides m_pad exactly so there
    # is no additional tail padding / wasted final grid step.
    m_pad = pl.cdiv(M, LANE) * LANE
    if m_pad != M:
        x_cm = jnp.pad(x_cm, ((0, 0), (0, m_pad - M)))

    tm = _pick_tile(m_pad, tile_m)
    n_tiles = m_pad // tm

    w1 = params["w1"].astype(jnp.bfloat16)   # (D, C_in)
    w2 = params["w2"].astype(jnp.bfloat16)   # (D, D)
    b1 = params["b1"].astype(jnp.float32)    # (D, 1)
    b2 = params["b2"].astype(jnp.float32)    # (D, 1)

    # Explicit VMEM budget: double-buffered activation tiles + (double-buffered)
    # resident weights/biases, with generous headroom.  Capped at 32 MiB so it
    # stays inside v7x's scoped VMEM; v5e/v6e have more.
    act_bytes = tm * c_in * 2 + tm * D * 4
    wgt_bytes = D * c_in * 2 + D * D * 2 + 2 * D * 4
    vmem_limit = int(min(32 * 1024 * 1024,
                         max(8 * 1024 * 1024, 4 * 2 * (act_bytes + wgt_bytes))))

    out_cm = pl.pallas_call(
        prenet_kernel,
        out_shape=jax.ShapeDtypeStruct((D, m_pad), jnp.float32),
        grid_spec=pltpu.PrefetchScalarGridSpec(
            num_scalar_prefetch=0,
            grid=(n_tiles,),
            in_specs=[
                pl.BlockSpec((c_in, tm), lambda i: (0, i)),   # activations (lane-dense)
                pl.BlockSpec((D, c_in), lambda i: (0, 0)),    # W1 (resident)
                pl.BlockSpec((D, 1), lambda i: (0, 0)),       # b1
                pl.BlockSpec((D, D), lambda i: (0, 0)),       # W2 (resident)
                pl.BlockSpec((D, 1), lambda i: (0, 0)),       # b2
            ],
            out_specs=pl.BlockSpec((D, tm), lambda i: (0, i)),
        ),
        compiler_params=pltpu.CompilerParams(
            dimension_semantics=("parallel",),
            vmem_limit_bytes=vmem_limit),
    )(x_cm, w1, b1, w2, b2)

    y = out_cm[:, :M].reshape(D, B, L)
    return jnp.transpose(y, (1, 0, 2))                              # (B, D, L)


# ----------------------------------------------------------------------------
# Deterministic synthetic parameters (Conv1d(k=1) weight layout: (out, in))
# ----------------------------------------------------------------------------
def init_params(key, in_dim, dim):
    k1, k2, k3, k4 = jax.random.split(key, 4)

    def nrm(k, shape, scale=0.1):
        return (jax.random.normal(k, shape) * scale).astype(jnp.float32)

    return {
        "w1": nrm(k1, (dim, in_dim)),     # Conv1d(in_dim, dim, 1).weight[..., 0]
        "b1": nrm(k2, (dim, 1), 0.01),    # Conv1d bias (column for lane-broadcast)
        "w2": nrm(k3, (dim, dim)),        # Conv1d(dim, dim, 1).weight[..., 0]
        "b2": nrm(k4, (dim, 1), 0.01),
    }


# ----------------------------------------------------------------------------
# Pure-JAX reference of the PyTorch forward (deterministic eval path)
# ----------------------------------------------------------------------------
def reference_forward(params, x, *, match_kernel_dtype=False):
    B, c_in, L = x.shape
    x_cm = jnp.transpose(x, (1, 0, 2)).reshape(c_in, B * L)
    w1, w2 = params["w1"], params["w2"]
    if match_kernel_dtype:
        x_cm = x_cm.astype(jnp.bfloat16)
        w1 = w1.astype(jnp.bfloat16)
        w2 = w2.astype(jnp.bfloat16)
    h = jax.nn.relu(jnp.dot(w1, x_cm, preferred_element_type=jnp.float32)
                    + params["b1"])
    h2 = h.astype(jnp.bfloat16) if match_kernel_dtype else h
    y = jax.nn.relu(jnp.dot(w2, h2, preferred_element_type=jnp.float32)
                    + params["b2"])
    D = y.shape[0]
    return jnp.transpose(y.reshape(D, B, L), (1, 0, 2))


# ----------------------------------------------------------------------------
if __name__ == "__main__":
    # M = B*L = 256 -> two 128-lane tiles (lane-dense stores, 2 parallel steps).
    B, in_dim, dim, L = 2, 8, 32, 128

    key = jax.random.PRNGKey(0)
    kp, kx = jax.random.split(key)
    params = init_params(kp, in_dim, dim)
    x = jax.random.normal(kx, (B, in_dim, L), jnp.float32)

    out = prenet_forward(params, x)
    jax.block_until_ready(out)
    assert out.shape == (B, dim, L), out.shape

    # Tight check vs a reference that uses the same bf16 MXU operands.
    ref_bf16 = reference_forward(params, x, match_kernel_dtype=True)
    err_bf16 = float(jnp.max(jnp.abs(out - ref_bf16)))
    assert err_bf16 < 1e-3, f"mismatch vs bf16-matched reference: {err_bf16}"

    # Loose sanity check vs the full-f32 reference.
    ref_f32 = reference_forward(params, x)
    err_f32 = float(jnp.max(jnp.abs(out - ref_f32)))
    assert err_f32 < 5e-2, f"mismatch vs f32 reference: {err_f32}"

    print("KERNEL_OK")
</pallas_src>

<mosaic_0001>
module attributes {stable_mosaic.version = 11 : i64} {
  func.func @prenet_kernel(%arg0: i32, %arg1: memref<8x128xbf16, #tpu.memory_space<vmem>>, %arg2: memref<32x8xbf16, #tpu.memory_space<vmem>>, %arg3: memref<32x1xf32, #tpu.memory_space<vmem>>, %arg4: memref<32x32xbf16, #tpu.memory_space<vmem>>, %arg5: memref<32x1xf32, #tpu.memory_space<vmem>>, %arg6: memref<32x128xf32, #tpu.memory_space<vmem>>) attributes {dimension_semantics = [#tpu.dimension_semantics<parallel>], iteration_bounds = array<i64: 2>, scalar_prefetch = 0 : i64, scratch_operands = 0 : i64, tpu.core_type = #tpu.core_type<tc>, window_params = [{transform_indices = @transform_0, window_bounds = array<i64: 8, 128>}, {pipeline_mode = #tpu.pipeline_mode<synchronous>, transform_indices = @transform_1, window_bounds = array<i64: 32, 8>}, {pipeline_mode = #tpu.pipeline_mode<synchronous>, transform_indices = @transform_2, window_bounds = array<i64: 32, 1>}, {pipeline_mode = #tpu.pipeline_mode<synchronous>, transform_indices = @transform_3, window_bounds = array<i64: 32, 32>}, {pipeline_mode = #tpu.pipeline_mode<synchronous>, transform_indices = @transform_4, window_bounds = array<i64: 32, 1>}, {transform_indices = @transform_5, window_bounds = array<i64: 32, 128>}]} {
    %c0 = arith.constant 0 : index
    %c0_0 = arith.constant 0 : index
    %0 = vector.load %arg1[%c0, %c0_0] : memref<8x128xbf16, #tpu.memory_space<vmem>>, vector<8x128xbf16>
    %c0_1 = arith.constant 0 : index
    %c0_2 = arith.constant 0 : index
    %1 = vector.load %arg2[%c0_1, %c0_2] : memref<32x8xbf16, #tpu.memory_space<vmem>>, vector<32x8xbf16>
    %cst = arith.constant dense<0.000000e+00> : vector<32x128xf32>
    %2 = tpu.matmul %1, %0, %cst {dimension_numbers = #tpu.dot_dimension_numbers<[1], [0], [0], [1], [0, 0, 1, 1], [], []>} : vector<32x8xbf16>, vector<8x128xbf16>, vector<32x128xf32> -> vector<32x128xf32>
    %c0_3 = arith.constant 0 : index
    %c0_4 = arith.constant 0 : index
    %3 = vector.load %arg3[%c0_3, %c0_4] : memref<32x1xf32, #tpu.memory_space<vmem>>, vector<32x1xf32>
    %4 = vector.broadcast %3 : vector<32x1xf32> to vector<32x128xf32>
    %5 = arith.addf %2, %4 : vector<32x128xf32>
    %cst_5 = arith.constant 0.000000e+00 : f32
    %6 = vector.broadcast %cst_5 : f32 to vector<32x128xf32>
    %7 = arith.maximumf %5, %6 : vector<32x128xf32>
    %c0_6 = arith.constant 0 : index
    %c0_7 = arith.constant 0 : index
    %8 = vector.load %arg4[%c0_6, %c0_7] : memref<32x32xbf16, #tpu.memory_space<vmem>>, vector<32x32xbf16>
    %9 = arith.truncf %7 : vector<32x128xf32> to vector<32x128xbf16>
    %cst_8 = arith.constant dense<0.000000e+00> : vector<32x128xf32>
    %10 = tpu.matmul %8, %9, %cst_8 {dimension_numbers = #tpu.dot_dimension_numbers<[1], [0], [0], [1], [0, 0, 1, 1], [], []>} : vector<32x32xbf16>, vector<32x128xbf16>, vector<32x128xf32> -> vector<32x128xf32>
    %c0_9 = arith.constant 0 : index
    %c0_10 = arith.constant 0 : index
    %11 = vector.load %arg5[%c0_9, %c0_10] : memref<32x1xf32, #tpu.memory_space<vmem>>, vector<32x1xf32>
    %12 = vector.broadcast %11 : vector<32x1xf32> to vector<32x128xf32>
    %13 = arith.addf %10, %12 : vector<32x128xf32>
    %cst_11 = arith.constant 0.000000e+00 : f32
    %14 = vector.broadcast %cst_11 : f32 to vector<32x128xf32>
    %15 = arith.maximumf %13, %14 : vector<32x128xf32>
    %c0_12 = arith.constant 0 : index
    %c0_13 = arith.constant 0 : index
    %16 = vector.load %arg6[%c0_12, %c0_13] : memref<32x128xf32, #tpu.memory_space<vmem>>, vector<32x128xf32>
    tpu.vector_store %arg6[%c0_12, %c0_13], %15 {strides = array<i32>} : memref<32x128xf32, #tpu.memory_space<vmem>>, vector<32x128xf32>,
    return
  }
  func.func @transform_0(%arg0: i32) -> (i32, i32) {
    %c0_i32 = arith.constant 0 : i32
    %c0_i32_0 = arith.constant 0 : i32
    return %c0_i32, %arg0 : i32, i32
  }
  func.func @transform_1(%arg0: i32) -> (i32, i32) {
    %c0_i32 = arith.constant 0 : i32
    %c0_i32_0 = arith.constant 0 : i32
    %c0_i32_1 = arith.constant 0 : i32
    return %c0_i32, %c0_i32_0 : i32, i32
  }
  func.func @transform_2(%arg0: i32) -> (i32, i32) {
    %c0_i32 = arith.constant 0 : i32
    %c0_i32_0 = arith.constant 0 : i32
    %c0_i32_1 = arith.constant 0 : i32
    return %c0_i32, %c0_i32_0 : i32, i32
  }
  func.func @transform_3(%arg0: i32) -> (i32, i32) {
    %c0_i32 = arith.constant 0 : i32
    %c0_i32_0 = arith.constant 0 : i32
    %c0_i32_1 = arith.constant 0 : i32
    return %c0_i32, %c0_i32_0 : i32, i32
  }
  func.func @transform_4(%arg0: i32) -> (i32, i32) {
    %c0_i32 = arith.constant 0 : i32
    %c0_i32_0 = arith.constant 0 : i32
    %c0_i32_1 = arith.constant 0 : i32
    return %c0_i32, %c0_i32_0 : i32, i32
  }
  func.func @transform_5(%arg0: i32) -> (i32, i32) {
    %c0_i32 = arith.constant 0 : i32
    %c0_i32_0 = arith.constant 0 : i32
    return %c0_i32, %arg0 : i32, i32
  }
}

</mosaic_0001>

<llo_original>
// kernel: tpu_custom_call.1
$region0: #{tpu_custom_call.1}
  #allocation0 [shape = 'u32[]', space=smem, size = 0x4, offset = 0x4, fixed_abs, tag = 'smem constant byte address 0x4 - core index']
  #allocation1 [shape = 'u32[144,128]{1,0:T(1,128)}', space=vmem, size = 0x12000, scoped, tag = 'internal scratch']
  %s0 = inlined_call_operand.vmem [shape: bf16[8,256], index: 0, kind: input, shape index: {}]
  %s1 = inlined_call_operand.vmem [shape: bf16[32,8], index: 1, kind: input, shape index: {}]
  %s2 = inlined_call_operand.vmem [shape: f32[32,1], index: 2, kind: input, shape index: {}]
  %s3 = inlined_call_operand.vmem [shape: bf16[32,32], index: 3, kind: input, shape index: {}]
  %s4 = inlined_call_operand.vmem [shape: f32[32,1], index: 4, kind: input, shape index: {}]
  %s5 = inlined_call_operand.hbm [shape: f32[32,256], index: 5, kind: output, shape index: {}]
  %s6 = sld [smem:[#allocation0]]
  $region53: #{tpu_custom_call.1} parent=0
    _
  %s8 = ssub.s32 1, %s6
  %s9 = scalar_select 0, %s8, %s6
  $region1: #{tpu_custom_call.1} parent=0
    #allocation2 [shape = 'u8[32768]{0}', space=vmem, size = 0x8000, scoped, tag = 'output window, operand 0']
    #allocation3 [shape = 's32[2]{0}', space=sflag, size = 0x8, scoped, tag = 'scoped memory for tpu_custom_call.1']
    %10 = vsyncpa [#allocation3], 0
    %s11 = scalar_lea.sflag [#allocation3], 1
    %12 = vsyncpa %s11, 0
    loop: start=0, step=1, limit=4
    $region2: #{tpu_custom_call.1} parent=1 // loop_pre_header
      _
    $region3: #{tpu_custom_call.1} parent=1 // loop_header
      %s14 = sphi 0, %s18
      %p15 = scmp.ge.s32.totalorder %s14, 4
      %s24 = sphi 0, %s26
      %s27 = sphi 0, %s24
      %s28 = sphi 0, %s27
      %s44 = sphi 0, %s28
      %s48 = sphi 0, %s48
      %s50 = sphi 0, %s48
      %s51 = sphi 0, %s50
      %s65 = sphi 0, %s51
      %s69 = sphi 0, %s69
      %s71 = sphi 0, %s69
      %s72 = sphi 0, %s71
      %s86 = sphi 0, %s72
      %s90 = sphi 0, %s90
      %s92 = sphi 0, %s90
      %s93 = sphi 0, %s92
      %s107 = sphi 0, %s93
      %s111 = sphi 0, %s111
      %s113 = sphi 0, %s111
      %s114 = sphi 0, %s113
      %s128 = sphi 0, %s114
      %s134 = sphi 0, %s136
      %s137 = sphi 0, %s134
      %s138 = sphi 0, %s137
      %s154 = sphi 0, %s138
    $region4: #{tpu_custom_call.1} parent=1 // loop_header_branch
      %17 = sbr.rel (%p15) target = $region8
    $region5: #{tpu_custom_call.1} parent=1 // loop_body
      %s19 = ssub.s32 %s14, 1
      %s20 = ssub.s32 %s14, 2
      %s21 = sadd.s32 %s14, 1
      %s22 = ssub.s32 %s14, %s21
      %p23 = scmp.eq.s32.totalorder %s22, 0
      %s25 = sadd.s32 %s24, 1
      %s26 = scalar_select %p23, %s24, %s25
      %p29 = pneg %p23
      %p30 = scmp.eq.s32.totalorder %s14, 1
      %p31 = por %p29, %p30
      %p32 = scmp.ne.s32.totalorder %s24, %s27
      %p33 = scmp.eq.s32.totalorder %s14, 0
      %p34 = por %p32, %p33
      %p35 = scmp.ne.s32.totalorder %s24, %s27
      %p36 = scmp.eq.s32.totalorder %s19, 1
      %p37 = por %p35, %p36
      %p38 = scmp.ne.s32.totalorder %s27, %s28
      %p39 = scmp.eq.s32.totalorder %s19, 0
      %p40 = por %p38, %p39
      %p41 = scmp.ne.s32.totalorder %s27, %s28
      %p42 = scmp.eq.s32.totalorder %s20, 1
      %p43 = por %p41, %p42
      %p45 = scmp.ne.s32.totalorder %s28, %s44
      %p46 = scmp.eq.s32.totalorder %s20, 0
      %p47 = por %p45, %p46
      %s49 = sadd.s32 %s48, 1
      %p52 = scmp.eq.s32.totalorder %s14, 1
      %p53 = scmp.ne.s32.totalorder %s48, %s50
      %p54 = scmp.eq.s32.totalorder %s14, 0
      %p55 = por %p53, %p54
      %p56 = scmp.ne.s32.totalorder %s48, %s50
      %p57 = scmp.eq.s32.totalorder %s19, 1
      %p58 = por %p56, %p57
      %p59 = scmp.ne.s32.totalorder %s50, %s51
      %p60 = scmp.eq.s32.totalorder %s19, 0
      %p61 = por %p59, %p60
      %p62 = scmp.ne.s32.totalorder %s50, %s51
      %p63 = scmp.eq.s32.totalorder %s20, 1
      %p64 = por %p62, %p63
      %p66 = scmp.ne.s32.totalorder %s51, %s65
      %p67 = scmp.eq.s32.totalorder %s20, 0
      %p68 = por %p66, %p67
      %s70 = sadd.s32 %s69, 1
      %p73 = scmp.eq.s32.totalorder %s14, 1
      %p74 = scmp.ne.s32.totalorder %s69, %s71
      %p75 = scmp.eq.s32.totalorder %s14, 0
      %p76 = por %p74, %p75
      %p77 = scmp.ne.s32.totalorder %s69, %s71
      %p78 = scmp.eq.s32.totalorder %s19, 1
      %p79 = por %p77, %p78
      %p80 = scmp.ne.s32.totalorder %s71, %s72
      %p81 = scmp.eq.s32.totalorder %s19, 0
      %p82 = por %p80, %p81
      %p83 = scmp.ne.s32.totalorder %s71, %s72
      %p84 = scmp.eq.s32.totalorder %s20, 1
      %p85 = por %p83, %p84
      %p87 = scmp.ne.s32.totalorder %s72, %s86
      %p88 = scmp.eq.s32.totalorder %s20, 0
      %p89 = por %p87, %p88
      %s91 = sadd.s32 %s90, 1
      %p94 = scmp.eq.s32.totalorder %s14, 1
      %p95 = scmp.ne.s32.totalorder %s90, %s92
      %p96 = scmp.eq.s32.totalorder %s14, 0
      %p97 = por %p95, %p96
      %p98 = scmp.ne.s32.totalorder %s90, %s92
      %p99 = scmp.eq.s32.totalorder %s19, 1
      %p100 = por %p98, %p99
      %p101 = scmp.ne.s32.totalorder %s92, %s93
      %p102 = scmp.eq.s32.totalorder %s19, 0
      %p103 = por %p101, %p102
      %p104 = scmp.ne.s32.totalorder %s92, %s93
      %p105 = scmp.eq.s32.totalorder %s20, 1
      %p106 = por %p104, %p105
      %p108 = scmp.ne.s32.totalorder %s93, %s107
      %p109 = scmp.eq.s32.totalorder %s20, 0
      %p110 = por %p108, %p109
      %s112 = sadd.s32 %s111, 1
      %p115 = scmp.eq.s32.totalorder %s14, 1
      %p116 = scmp.ne.s32.totalorder %s111, %s113
      %p117 = scmp.eq.s32.totalorder %s14, 0
      %p118 = por %p116, %p117
      %p119 = scmp.ne.s32.totalorder %s111, %s113
      %p120 = scmp.eq.s32.totalorder %s19, 1
      %p121 = por %p119, %p120
      %p122 = scmp.ne.s32.totalorder %s113, %s114
      %p123 = scmp.eq.s32.totalorder %s19, 0
      %p124 = por %p122, %p123
      %p125 = scmp.ne.s32.totalorder %s113, %s114
      %p126 = scmp.eq.s32.totalorder %s20, 1
      %p127 = por %p125, %p126
      %p129 = scmp.ne.s32.totalorder %s114, %s128
      %p130 = scmp.eq.s32.totalorder %s20, 0
      %p131 = por %p129, %p130
      %s132 = ssub.s32 %s14, %s21
      %p133 = scmp.eq.s32.totalorder %s132, 0
      %s135 = sadd.s32 %s134, 1
      %s136 = scalar_select %p133, %s134, %s135
      %p139 = pneg %p133
      %p140 = scmp.eq.s32.totalorder %s14, 1
      %p141 = por %p139, %p140
      %p142 = scmp.ne.s32.totalorder %s134, %s137
      %p143 = scmp.eq.s32.totalorder %s14, 0
      %p144 = por %p142, %p143
      %p145 = scmp.ne.s32.totalorder %s134, %s137
      %p146 = scmp.eq.s32.totalorder %s19, 1
      %p147 = por %p145, %p146
      %p148 = scmp.ne.s32.totalorder %s137, %s138
      %p149 = scmp.eq.s32.totalorder %s19, 0
      %p150 = por %p148, %p149
      %p151 = scmp.ne.s32.totalorder %s137, %s138
      %p152 = scmp.eq.s32.totalorder %s20, 1
      %p153 = por %p151, %p152
      %p155 = scmp.ne.s32.totalorder %s138, %s154
      %p156 = scmp.eq.s32.totalorder %s20, 0
      %p157 = por %p155, %p156
      %p158 = scmp.le.s32.totalorder 1, %s14
      %p159 = scmp.lt.s32.totalorder %s14, 3
      %p160 = pnand %p158, %p159
      %p161 = pneg %p160
      // Predicated region
      $region9: #{tpu_custom_call.1} parent=5 // pred_check
        _
      $region10: #{tpu_custom_call.1} parent=5 // pred_check_branch
        %163 = sbr.rel (%p160) target = $region12
      $region11: #{tpu_custom_call.1} parent=5 // pred_region
        %s164 = ssub.s32 %s14, 1
        // Predicated region
        $region13: #{tpu_custom_call.1} parent=11 // pred_check
          %p165 = pneg %p61
        $region14: #{tpu_custom_call.1} parent=11 // pred_check_branch
          %167 = sbr.rel (%p165) target = $region16
        $region15: #{tpu_custom_call.1} parent=11 // pred_region
          _
        $region16: #{tpu_custom_call.1} parent=11 // pred_fallthru
          _
        // Predicated region
        $region17: #{tpu_custom_call.1} parent=11 // pred_check
          %p168 = pneg %p82
        $region18: #{tpu_custom_call.1} parent=11 // pred_check_branch
          %170 = sbr.rel (%p168) target = $region20
        $region19: #{tpu_custom_call.1} parent=11 // pred_region
          _
        $region20: #{tpu_custom_call.1} parent=11 // pred_fallthru
          _
        // Predicated region
        $region21: #{tpu_custom_call.1} parent=11 // pred_check
          %p171 = pneg %p103
        $region22: #{tpu_custom_call.1} parent=11 // pred_check_branch
          %173 = sbr.rel (%p171) target = $region24
        $region23: #{tpu_custom_call.1} parent=11 // pred_region
          _
        $region24: #{tpu_custom_call.1} parent=11 // pred_fallthru
          _
        // Predicated region
        $region25: #{tpu_custom_call.1} parent=11 // pred_check
          %p174 = pneg %p124
        $region26: #{tpu_custom_call.1} parent=11 // pred_check_branch
          %176 = sbr.rel (%p174) target = $region28
        $region27: #{tpu_custom_call.1} parent=11 // pred_region
          _
        $region28: #{tpu_custom_call.1} parent=11 // pred_fallthru
          _
      $region12: #{tpu_custom_call.1} parent=5 // pred_fallthru
        _
      %p177 = scmp.lt.s32.totalorder %s14, 2
      // Predicated region
      $region29: #{tpu_custom_call.1} parent=5 // pred_check
        %p178 = pneg %p177
      $region30: #{tpu_custom_call.1} parent=5 // pred_check_branch
        %180 = sbr.rel (%p178) target = $region32
      $region31: #{tpu_custom_call.1} parent=5 // pred_region
        // Predicated region
        $region33: #{tpu_custom_call.1} parent=31 // pred_check
          %p181 = pneg %p34
        $region34: #{tpu_custom_call.1} parent=31 // pred_check_branch
          %183 = sbr.rel (%p181) target = $region36
        $region35: #{tpu_custom_call.1} parent=31 // pred_region
          %p184 = scmp.lt.s32.totalorder %s14, 1
          %s185 = scalar_select %p184, %s14, 1
          %s186 = smul.addr %s185, 4
          %s187 = scalar_lea.vmem %s0, %s186
        $region36: #{tpu_custom_call.1} parent=31 // pred_fallthru
          _
      $region32: #{tpu_custom_call.1} parent=5 // pred_fallthru
        _
      %p188 = scmp.le.s32.totalorder 1, %s14
      %p189 = scmp.lt.s32.totalorder %s14, 3
      %p190 = pnand %p188, %p189
      %p191 = pneg %p190
      // Predicated region
      $region37: #{tpu_custom_call.1} parent=5 // pred_check
        _
      $region38: #{tpu_custom_call.1} parent=5 // pred_check_branch
        %193 = sbr.rel (%p190) target = $region40
      $region39: #{tpu_custom_call.1} parent=5 // pred_region
        %s194 = ssub.s32 %s14, 1
        %p195 = scmp.lt.s32.totalorder %s19, 1
        %s196 = scalar_select %p195, %s19, 1
        %s197 = smul.addr %s196, 4
        %s198 = scalar_lea.vmem %s0, %s197
        %p199 = pneg %p40
        %p200 = pneg %p37
        %p201 = pneg %p61
        %p202 = pneg %p58
        %p203 = pneg %p82
        %p204 = pneg %p79
        %p205 = pneg %p103
        %p206 = pneg %p100
        %p207 = pneg %p124
        %p208 = pneg %p121
        %p209 = pneg %p150
        %p210 = pneg %p147
        %s211 = sand.u32 %s137, 1
        %s212 = scalar_lea.sflag [#allocation3], %s211
        %s213 = sand.u32 %s137, 1
        %s214 = smul.addr %s213, 32
        %s215 = scalar_lea.vmem [#allocation2], %s214
        %p216 = scmp.lt.s32.totalorder %s19, 1
        %s217 = scalar_select %p216, %s19, 1
        %s218 = smul.addr %s217, 4
        %s219 = scalar_lea.vmem %s0, %s218
        %v221 = vld [vmem:[%s219] sm:$0xf]
        %v222 = vld [vmem:[%s1] sm:$0xf]
        %v223 = vld [vmem:[%s1 + $0x4] sm:$0xf]
        %v224 = vld [vmem:[%s1 + $0x8] sm:$0xf]
        %v225 = vld [vmem:[%s1 + $0xc] sm:$0xf]
        %v226 = vld [vmem:[%s2] sm:$0xff]
        %v227 = vld [vmem:[%s2 + $0x8] sm:$0xff]
        %v228 = vld [vmem:[%s2 + $0x10] sm:$0xff]
        %v229 = vld [vmem:[%s2 + $0x18] sm:$0xff]
        %231 = vset.pattern.permute.xlu0 0
        %232 = vperm.xlu0 %231, %v226
        %v233 = vpop.permute.xlu0 %232
        %236 = vset.pattern.permute.xlu0 0
        %237 = vperm.xlu0 %236, %v227
        %v238 = vpop.permute.xlu0 %237
        %241 = vset.pattern.permute.xlu0 0
        %242 = vperm.xlu0 %241, %v228
        %v243 = vpop.permute.xlu0 %242
        %246 = vset.pattern.permute.xlu0 0
        %247 = vperm.xlu0 %246, %v229
        %v248 = vpop.permute.xlu0 %247
        %v254 = vunpack.c.l.b16 %v222
        %v255 = vunpack.c.l.b16 %v223
        %v256 = vunpack.c.l.b16 %v224
        %v257 = vunpack.c.l.b16 %v225
        %v258 = vpack.c.b16 %v255, %v254
        %v259 = vpack.c.b16 %v257, %v256
        %vm260 = vcmask 64512
        %v262 = vsel %vm260, %v258, 0
        %v265 = vsel %vm260, %v259, 0
        %vm267 = vcmask 1043456
        %v269 = vsel %vm267, %v221, 0
        %271 = vmatprep.subr.bf16.mxu0 0
        %272 = vmatpush1.bf16.msra.mxu0 %v269
        %273 = vmatprep.subr.bf16.mxu0 0
        %274 = vmatpush1.bf16.msra.mxu0 0
        %275 = vmatprep.subr.bf16.mxu0 0
        %276 = vmatpush1.bf16.msra.mxu0 0
        %277 = vmatprep.subr.bf16.mxu0 0
        %278 = vmatpush1.bf16.msra.mxu0 0
        %279 = vmatprep.subr.bf16.mxu0 0
        %280 = vmatpush1.bf16.msra.mxu0 0
        %281 = vmatprep.subr.bf16.mxu0 0
        %282 = vmatpush1.bf16.msra.mxu0 0
        %283 = vmatprep.subr.bf16.mxu0 0
        %284 = vmatpush1.bf16.msra.mxu0 0
        %285 = vmatprep.subr.bf16.mxu0 0
        %286 = vmatpush1.bf16.msra.mxu0 0
        %287 = vmatprep.subr.bf16.mxu0 0
        %288 = vmatpush1.bf16.msra.mxu0 0
        %289 = vmatprep.subr.bf16.mxu0 0
        %290 = vmatpush1.bf16.msra.mxu0 0
        %291 = vmatprep.subr.bf16.mxu0 0
        %292 = vmatpush1.bf16.msra.mxu0 0
        %293 = vmatprep.subr.bf16.mxu0 0
        %294 = vmatpush1.bf16.msra.mxu0 0
        %295 = vmatprep.subr.bf16.mxu0 0
        %296 = vmatpush1.bf16.msra.mxu0 0
        %297 = vmatprep.subr.bf16.mxu0 0
        %298 = vmatpush1.bf16.msra.mxu0 0
        %299 = vmatprep.subr.bf16.mxu0 0
        %300 = vmatpush1.bf16.msra.mxu0 0
        %301 = vmatprep.subr.bf16.mxu0 0
        %302 = vmatpush1.bf16.msra.mxu0 0
        %303 = vmatprep.mubr.bf16.mxu0 0
        %304 = vmatmul.mubr.bf16.gmra.mrb[0].mxu0 %v262
        %v305 = vpop.f32.mrb[0].mxu0
        %v306 = vadd.f32 %v233, %v305
        %v307 = vpop.f32.mrb[0].mxu0
        %v308 = vpop.f32.mrb[0].mxu0
        %v309 = vadd.f32 %v238, %v308
        %v310 = vpop.f32.mrb[0].mxu0
        %311 = vmatprep.mubr.bf16.mxu0 0
        %312 = vmatmul.mubr.bf16.gmra.mrb[0].mxu0 %v265
        %v313 = vpop.f32.mrb[0].mxu0
        %v314 = vadd.f32 %v243, %v313
        %v315 = vpop.f32.mrb[0].mxu0
        %v316 = vpop.f32.mrb[0].mxu0
        %v317 = vadd.f32 %v248, %v316
        %v318 = vpop.f32.mrb[0].mxu0
        %319 = vdwg.mxu0
        %v320 = vmax.f32 %v306, 0.0
        %v321 = vmax.f32 %v309, 0.0
        %v322 = vmax.f32 %v314, 0.0
        %v323 = vmax.f32 %v317, 0.0
        %v324 = vld [vmem:[%s3] sm:$0xf]
        %v325 = vld [vmem:[%s3 + $0x4] sm:$0xf]
        %v326 = vld [vmem:[%s3 + $0x8] sm:$0xf]
        %v327 = vld [vmem:[%s3 + $0xc] sm:$0xf]
        %v328 = vpack.c.bf16 %v321, %v320
        %v329 = vpack.c.bf16 %v323, %v322
        %v330 = vld [vmem:[%s4] sm:$0xff]
        %v331 = vld [vmem:[%s4 + $0x8] sm:$0xff]
        %v332 = vld [vmem:[%s4 + $0x10] sm:$0xff]
        %v333 = vld [vmem:[%s4 + $0x18] sm:$0xff]
        %335 = vset.pattern.permute.xlu0 0
        %336 = vperm.xlu0 %335, %v330
        %v337 = vpop.permute.xlu0 %336
        %340 = vset.pattern.permute.xlu0 0
        %341 = vperm.xlu0 %340, %v331
        %v342 = vpop.permute.xlu0 %341
        %345 = vset.pattern.permute.xlu0 0
        %346 = vperm.xlu0 %345, %v332
        %v347 = vpop.permute.xlu0 %346
        %350 = vset.pattern.permute.xlu0 0
        %351 = vperm.xlu0 %350, %v333
        %v352 = vpop.permute.xlu0 %351
        %v358 = vunpack.c.l.b16 %v324
        %v359 = vunpack.c.l.b16 %v325
        %v360 = vunpack.c.l.b16 %v326
        %v361 = vunpack.c.l.b16 %v327
        %v362 = vpack.c.b16 %v359, %v358
        %v363 = vpack.c.b16 %v361, %v360
        %vm364 = vcmask 261120
        %v366 = vsel %vm364, %v362, 0
        %v369 = vsel %vm364, %v363, 0
        %371 = vmatprep.subr.bf16.mxu0 0
        %372 = vmatpush1.bf16.msra.mxu0 %v328
        %373 = vmatprep.subr.bf16.mxu0 0
        %374 = vmatpush1.bf16.msra.mxu0 %v329
        %375 = vmatprep.subr.bf16.mxu0 0
        %376 = vmatpush1.bf16.msra.mxu0 0
        %377 = vmatprep.subr.bf16.mxu0 0
        %378 = vmatpush1.bf16.msra.mxu0 0
        %379 = vmatprep.subr.bf16.mxu0 0
        %380 = vmatpush1.bf16.msra.mxu0 0
        %381 = vmatprep.subr.bf16.mxu0 0
        %382 = vmatpush1.bf16.msra.mxu0 0
        %383 = vmatprep.subr.bf16.mxu0 0
        %384 = vmatpush1.bf16.msra.mxu0 0
        %385 = vmatprep.subr.bf16.mxu0 0
        %386 = vmatpush1.bf16.msra.mxu0 0
        %387 = vmatprep.subr.bf16.mxu0 0
        %388 = vmatpush1.bf16.msra.mxu0 0
        %389 = vmatprep.subr.bf16.mxu0 0
        %390 = vmatpush1.bf16.msra.mxu0 0
        %391 = vmatprep.subr.bf16.mxu0 0
        %392 = vmatpush1.bf16.msra.mxu0 0
        %393 = vmatprep.subr.bf16.mxu0 0
        %394 = vmatpush1.bf16.msra.mxu0 0
        %395 = vmatprep.subr.bf16.mxu0 0
        %396 = vmatpush1.bf16.msra.mxu0 0
        %397 = vmatprep.subr.bf16.mxu0 0
        %398 = vmatpush1.bf16.msra.mxu0 0
        %399 = vmatprep.subr.bf16.mxu0 0
        %400 = vmatpush1.bf16.msra.mxu0 0
        %401 = vmatprep.subr.bf16.mxu0 0
        %402 = vmatpush1.bf16.msra.mxu0 0
        %403 = vmatprep.mubr.bf16.mxu0 0
        %404 = vmatmul.mubr.bf16.gmra.mrb[0].mxu0 %v366
        %v405 = vpop.f32.mrb[0].mxu0
        %v406 = vadd.f32 %v337, %v405
        %v407 = vpop.f32.mrb[0].mxu0
        %v408 = vpop.f32.mrb[0].mxu0
        %v409 = vadd.f32 %v342, %v408
        %v410 = vpop.f32.mrb[0].mxu0
        %411 = vmatprep.mubr.bf16.mxu0 0
        %412 = vmatmul.mubr.bf16.gmra.mrb[0].mxu0 %v369
        %v413 = vpop.f32.mrb[0].mxu0
        %v414 = vadd.f32 %v347, %v413
        %v415 = vpop.f32.mrb[0].mxu0
        %v416 = vpop.f32.mrb[0].mxu0
        %v417 = vadd.f32 %v352, %v416
        %v418 = vpop.f32.mrb[0].mxu0
        %419 = vdwg.mxu0
        %v420 = vmax.f32 %v406, 0.0
        %v421 = vmax.f32 %v409, 0.0
        %v422 = vmax.f32 %v414, 0.0
        %v423 = vmax.f32 %v417, 0.0
        %424 = vst [vmem:[%s215] sm:$0xff] %v420
        %425 = vst [vmem:[%s215 + $0x8] sm:$0xff] %v421
        %426 = vst [vmem:[%s215 + $0x10] sm:$0xff] %v422
        %427 = vst [vmem:[%s215 + $0x18] sm:$0xff] %v423
        %s428 = sand.u32 %s137, 1
        %s429 = scalar_lea.sflag [#allocation3], %s428
        %s430 = sand.u32 %s137, 1
        %s431 = smul.addr %s430, 32
        %s432 = scalar_lea.vmem [#allocation2], %s431
        // Predicated region
        $region41: #{tpu_custom_call.1} parent=39 // pred_check
          %p433 = pneg %p147
        $region42: #{tpu_custom_call.1} parent=39 // pred_check_branch
          %435 = sbr.rel (%p433) target = $region44
        $region43: #{tpu_custom_call.1} parent=39 // pred_region
          %s437 = ssub.s32 512, 512
          %438 = vsyncadd %s429, %s437
          %s439 = smul.addr %s19, 128
          %s440 = scalar_lea.hbm %s5, %s439
          %s441 = sshll.u32 %s432, 4
          %s442 = int_to_ptr.vmem [resolvable:$true] %s441
          %447 = dma.vmem_to_hbm [thread:$0]  %s442, 512, %s440, %s429, 128, 256, 8
        $region44: #{tpu_custom_call.1} parent=39 // pred_fallthru
          _
      $region40: #{tpu_custom_call.1} parent=5 // pred_fallthru
        _
      %p448 = scmp.le.s32.totalorder 2, %s14
      // Predicated region
      $region45: #{tpu_custom_call.1} parent=5 // pred_check
        %p449 = pneg %p448
      $region46: #{tpu_custom_call.1} parent=5 // pred_check_branch
        %451 = sbr.rel (%p449) target = $region48
      $region47: #{tpu_custom_call.1} parent=5 // pred_region
        %s452 = ssub.s32 %s14, 2
        // Predicated region
        $region49: #{tpu_custom_call.1} parent=47 // pred_check
          %p453 = pneg %p153
        $region50: #{tpu_custom_call.1} parent=47 // pred_check_branch
          %455 = sbr.rel (%p453) target = $region52
        $region51: #{tpu_custom_call.1} parent=47 // pred_region
          %s456 = sand.u32 %s138, 1
          %s457 = scalar_lea.sflag [#allocation3], %s456
          %s458 = sand.u32 %s138, 1
          %s459 = smul.addr %s458, 32
          %s460 = scalar_lea.vmem [#allocation2], %s459
          %461 = dma.done %s457, 512
        $region52: #{tpu_custom_call.1} parent=47 // pred_fallthru
          _
      $region48: #{tpu_custom_call.1} parent=5 // pred_fallthru
        _
    $region6: #{tpu_custom_call.1} parent=1 // loop_footer
      %s18 = sadd.s32 1, %s14
    $region7: #{tpu_custom_call.1} parent=1 // loop_footer_branch
      %13 = sbr.rel target = $region3
    $region8: #{tpu_custom_call.1} parent=1 // loop_exit
      _
    %462 = vsyncpa [#allocation3], 1
    %s463 = scalar_lea.sflag [#allocation3], 1
    %464 = vsyncpa %s463, 1

</llo_original>
